<compile_context>
chip_gen: v5e
topology: v5e:2x2
jax: 0.10.0
libtpu: 0.0.40
codegen_flags: <defaults>
</compile_context>

<pallas_src>
import jax
import jax.numpy as jnp
from jax import lax
from jax.experimental import pallas as pl
from jax.experimental.pallas import tpu as pltpu


_NT_DIMS = (((1,), (1,)), ((), ()))  # contract lhs & rhs on their last dims: A @ B^T


def net_kernel(x_ref, w1_ref, b1_ref, w2_ref, b2_ref, w3_ref, b3_ref, yT_ref):
    """One batch tile, computed transposed: fc1+relu -> fc2+relu -> fc3 -> softmax."""
    # In-kernel bf16 cast of the streamed activations (cheap VPU work hidden by
    # the pipeline) instead of a separate wrapper-side HBM cast pass over x.
    x = x_ref[...].astype(jnp.bfloat16)                       # (tm, d_in)

    # fc1 + relu:  hT = W1 @ x^T via NT contraction -> (256, tm), f32 accumulate.
    hT = lax.dot_general(w1_ref[...], x, _NT_DIMS,
                         preferred_element_type=jnp.float32) + b1_ref[...]
    hT = jnp.maximum(hT, 0.0)

    # fc2 + relu:  zT = W2 @ hT -> (64, tm)
    zT = jnp.dot(w2_ref[...], hT.astype(jnp.bfloat16),
                 preferred_element_type=jnp.float32) + b2_ref[...]
    zT = jnp.maximum(zT, 0.0)

    # fc3:  logitsT = W3 @ zT -> (n_out, tm); softmax over the class axis
    # (PyTorch dim=1), which is the sublane axis here (batch stays lane-dense).
    lT = jnp.dot(w3_ref[...], zT.astype(jnp.bfloat16),
                 preferred_element_type=jnp.float32) + b3_ref[...]
    m = jnp.max(lT, axis=0, keepdims=True)
    e = jnp.exp(lT - m)
    denom = jnp.sum(e, axis=0, keepdims=True)
    yT_ref[...] = (e * pl.reciprocal(denom)).astype(yT_ref.dtype)


def _round_up(x, m):
    return ((x + m - 1) // m) * m


def net_forward(x, params, *, tm_max=2048):
    """x: (B, n_bits**2) -> (B, 5) float32 softmax probabilities."""
    w1, b1, w2, b2, w3, b3 = params
    B, d_in = x.shape
    n_out = w3.shape[0]

    # Batch tile: full-array single tile for tiny batches; otherwise a multiple
    # of 128 (keeps the transposed (n_out, tm) output block lane-aligned) sized
    # for >= 2 grid steps so both v7x TensorCores get work, capped at tm_max.
    if B <= 128:
        tm = B
    else:
        tm = min(tm_max, max(128, _round_up(pl.cdiv(B, 2), 128)))
    # Last block may be partial: OOB input rows are row-local garbage (no
    # cross-row reduction exists), OOB output lanes are write-masked.
    grid = (pl.cdiv(B, tm),)

    const = lambda i: (0, 0)   # weights/biases stay VMEM-resident across steps

    flops = 2 * B * (w1.shape[0] * w1.shape[1] + w2.shape[0] * w2.shape[1]
                     + w3.shape[0] * w3.shape[1])
    bytes_accessed = (x.size * x.dtype.itemsize
                      + sum(int(p.size) * p.dtype.itemsize for p in params)
                      + B * n_out * 4)

    yT = pl.pallas_call(
        net_kernel,
        out_shape=jax.ShapeDtypeStruct((n_out, B), jnp.float32),
        grid=grid,
        in_specs=[
            pl.BlockSpec((tm, d_in), lambda i: (i, 0)),   # x: streamed per tile
            pl.BlockSpec(w1.shape, const),
            pl.BlockSpec(b1.shape, const),
            pl.BlockSpec(w2.shape, const),
            pl.BlockSpec(b2.shape, const),
            pl.BlockSpec(w3.shape, const),
            pl.BlockSpec(b3.shape, const),
        ],
        out_specs=pl.BlockSpec((n_out, tm), lambda i: (0, i)),
        compiler_params=pltpu.CompilerParams(dimension_semantics=("parallel",)),
        cost_estimate=pl.CostEstimate(flops=flops, transcendentals=B * n_out,
                                      bytes_accessed=bytes_accessed),
    )(x, w1, b1, w2, b2, w3, b3)

    # Tiny (n_out, B) -> (B, n_out) layout fixup outside the kernel (20 B/row).
    return yT.T


def init_params(key, n_bits):
    """nn.Linear-style U(-1/sqrt(fan_in), 1/sqrt(fan_in)) init.
    Weights in PyTorch-native (out, in) layout, bf16 (MXU operands); biases are
    (out, 1) f32 columns (the kernel computes in features x batch orientation)."""
    d_in = n_bits ** 2
    dims = [(256, d_in), (64, 256), (5, 64)]
    params = []
    for fout, fin in dims:
        key, kw, kb = jax.random.split(key, 3)
        bound = 1.0 / jnp.sqrt(jnp.float32(fin))
        w = jax.random.uniform(kw, (fout, fin), jnp.float32, -bound, bound)
        b = jax.random.uniform(kb, (fout, 1), jnp.float32, -bound, bound)
        params += [w.astype(jnp.bfloat16), b]
    return tuple(params)


def net_forward_ref(x, params):
    """Pure-JAX f32 reference for correctness checking."""
    w1, b1, w2, b2, w3, b3 = params
    w1, w2, w3 = (w.astype(jnp.float32) for w in (w1, w2, w3))
    h = jnp.maximum(x @ w1.T + b1[:, 0], 0.0)
    z = jnp.maximum(h @ w2.T + b2[:, 0], 0.0)
    return jax.nn.softmax(z @ w3.T + b3[:, 0], axis=1)


if __name__ == "__main__":
    n_bits = 4          # -> input features = n_bits**2 = 16

    key = jax.random.PRNGKey(0)
    key, k1, k2 = jax.random.split(key, 3)
    params = init_params(key, n_bits)

    # Small batch: single-tile path (tm = B = 8, grid = 1).
    x_small = jax.random.normal(k1, (8, n_bits ** 2), jnp.float32)
    y_small = jax.block_until_ready(net_forward(x_small, params))
    assert y_small.shape == (8, 5)
    ref_small = net_forward_ref(x_small, params)
    # bf16 MXU operands -> relaxed tolerance vs f32 reference.
    assert jnp.allclose(y_small, ref_small, atol=2e-2, rtol=2e-2), "mismatch vs JAX reference"
    assert jnp.allclose(jnp.sum(y_small, axis=1), 1.0, atol=1e-3), "softmax rows must sum to 1"

    # Multi-tile path: grid = 2 with a partial last block (masked OOB rows).
    x_big = jax.random.normal(k2, (300, n_bits ** 2), jnp.float32)
    y_big = jax.block_until_ready(net_forward(x_big, params))
    assert y_big.shape == (300, 5)
    ref_big = net_forward_ref(x_big, params)
    assert jnp.allclose(y_big, ref_big, atol=2e-2, rtol=2e-2), "mismatch vs JAX reference (tiled)"
    assert jnp.allclose(jnp.sum(y_big, axis=1), 1.0, atol=1e-3), "softmax rows must sum to 1 (tiled)"

    print("KERNEL_OK")
</pallas_src>

<mosaic_0001>
module attributes {stable_mosaic.version = 11 : i64} {
  func.func @net_kernel(%arg0: i32, %arg1: memref<8x16xf32, #tpu.memory_space<vmem>>, %arg2: memref<256x16xbf16, #tpu.memory_space<vmem>>, %arg3: memref<256x1xf32, #tpu.memory_space<vmem>>, %arg4: memref<64x256xbf16, #tpu.memory_space<vmem>>, %arg5: memref<64x1xf32, #tpu.memory_space<vmem>>, %arg6: memref<5x64xbf16, #tpu.memory_space<vmem>>, %arg7: memref<5x1xf32, #tpu.memory_space<vmem>>, %arg8: memref<5x8xf32, #tpu.memory_space<vmem>>) attributes {dimension_semantics = [#tpu.dimension_semantics<parallel>], iteration_bounds = array<i64: 1>, scalar_prefetch = 0 : i64, scratch_operands = 0 : i64, tpu.core_type = #tpu.core_type<tc>, window_params = [{transform_indices = @transform_0, window_bounds = array<i64: 8, 16>}, {pipeline_mode = #tpu.pipeline_mode<synchronous>, transform_indices = @transform_1, window_bounds = array<i64: 256, 16>}, {pipeline_mode = #tpu.pipeline_mode<synchronous>, transform_indices = @transform_2, window_bounds = array<i64: 256, 1>}, {pipeline_mode = #tpu.pipeline_mode<synchronous>, transform_indices = @transform_3, window_bounds = array<i64: 64, 256>}, {pipeline_mode = #tpu.pipeline_mode<synchronous>, transform_indices = @transform_4, window_bounds = array<i64: 64, 1>}, {pipeline_mode = #tpu.pipeline_mode<synchronous>, transform_indices = @transform_5, window_bounds = array<i64: 5, 64>}, {pipeline_mode = #tpu.pipeline_mode<synchronous>, transform_indices = @transform_6, window_bounds = array<i64: 5, 1>}, {transform_indices = @transform_7, window_bounds = array<i64: 5, 8>}]} {
    %c0 = arith.constant 0 : index
    %c0_0 = arith.constant 0 : index
    %0 = vector.load %arg1[%c0, %c0_0] : memref<8x16xf32, #tpu.memory_space<vmem>>, vector<8x16xf32>
    %1 = arith.truncf %0 : vector<8x16xf32> to vector<8x16xbf16>
    %c0_1 = arith.constant 0 : index
    %c0_2 = arith.constant 0 : index
    %2 = vector.load %arg2[%c0_1, %c0_2] : memref<256x16xbf16, #tpu.memory_space<vmem>>, vector<256x16xbf16>
    %cst = arith.constant dense<0.000000e+00> : vector<256x8xf32>
    %3 = tpu.matmul %2, %1, %cst {dimension_numbers = #tpu.dot_dimension_numbers<[1], [1], [0], [0], [0, 0, 1, 0], [], []>} : vector<256x16xbf16>, vector<8x16xbf16>, vector<256x8xf32> -> vector<256x8xf32>
    %c0_3 = arith.constant 0 : index
    %c0_4 = arith.constant 0 : index
    %4 = vector.load %arg3[%c0_3, %c0_4] : memref<256x1xf32, #tpu.memory_space<vmem>>, vector<256x1xf32>
    %5 = vector.broadcast %4 : vector<256x1xf32> to vector<256x8xf32>
    %6 = arith.addf %3, %5 : vector<256x8xf32>
    %cst_5 = arith.constant 0.000000e+00 : f32
    %7 = vector.broadcast %cst_5 : f32 to vector<256x8xf32>
    %8 = arith.maximumf %6, %7 : vector<256x8xf32>
    %c0_6 = arith.constant 0 : index
    %c0_7 = arith.constant 0 : index
    %9 = vector.load %arg4[%c0_6, %c0_7] : memref<64x256xbf16, #tpu.memory_space<vmem>>, vector<64x256xbf16>
    %10 = arith.truncf %8 : vector<256x8xf32> to vector<256x8xbf16>
    %cst_8 = arith.constant dense<0.000000e+00> : vector<64x8xf32>
    %11 = tpu.matmul %9, %10, %cst_8 {dimension_numbers = #tpu.dot_dimension_numbers<[1], [0], [0], [1], [0, 0, 1, 1], [], []>} : vector<64x256xbf16>, vector<256x8xbf16>, vector<64x8xf32> -> vector<64x8xf32>
    %c0_9 = arith.constant 0 : index
    %c0_10 = arith.constant 0 : index
    %12 = vector.load %arg5[%c0_9, %c0_10] : memref<64x1xf32, #tpu.memory_space<vmem>>, vector<64x1xf32>
    %13 = vector.broadcast %12 : vector<64x1xf32> to vector<64x8xf32>
    %14 = arith.addf %11, %13 : vector<64x8xf32>
    %cst_11 = arith.constant 0.000000e+00 : f32
    %15 = vector.broadcast %cst_11 : f32 to vector<64x8xf32>
    %16 = arith.maximumf %14, %15 : vector<64x8xf32>
    %c0_12 = arith.constant 0 : index
    %c0_13 = arith.constant 0 : index
    %17 = vector.load %arg6[%c0_12, %c0_13] : memref<5x64xbf16, #tpu.memory_space<vmem>>, vector<5x64xbf16>
    %18 = arith.truncf %16 : vector<64x8xf32> to vector<64x8xbf16>
    %cst_14 = arith.constant dense<0.000000e+00> : vector<5x8xf32>
    %19 = tpu.matmul %17, %18, %cst_14 {dimension_numbers = #tpu.dot_dimension_numbers<[1], [0], [0], [1], [0, 0, 1, 1], [], []>} : vector<5x64xbf16>, vector<64x8xbf16>, vector<5x8xf32> -> vector<5x8xf32>
    %c0_15 = arith.constant 0 : index
    %c0_16 = arith.constant 0 : index
    %20 = vector.load %arg7[%c0_15, %c0_16] : memref<5x1xf32, #tpu.memory_space<vmem>>, vector<5x1xf32>
    %21 = vector.broadcast %20 : vector<5x1xf32> to vector<5x8xf32>
    %22 = arith.addf %19, %21 : vector<5x8xf32>
    %cst_17 = arith.constant dense<0xFF800000> : vector<8xf32>
    %23 = vector.multi_reduction <maximumf>, %22, %cst_17 [0] : vector<5x8xf32> to vector<8xf32>
    %24 = vector.shape_cast %23 : vector<8xf32> to vector<1x8xf32>
    %25 = vector.broadcast %24 : vector<1x8xf32> to vector<5x8xf32>
    %26 = arith.subf %22, %25 : vector<5x8xf32>
    %27 = math.exp %26 : vector<5x8xf32>
    %cst_18 = arith.constant dense<0.000000e+00> : vector<8xf32>
    %28 = vector.multi_reduction <add>, %27, %cst_18 [0] : vector<5x8xf32> to vector<8xf32>
    %29 = vector.shape_cast %28 : vector<8xf32> to vector<1x8xf32>
    %30 = tpu.reciprocal %29 : vector<1x8xf32> -> vector<1x8xf32>
    %31 = vector.broadcast %30 : vector<1x8xf32> to vector<5x8xf32>
    %32 = arith.mulf %27, %31 : vector<5x8xf32>
    %c0_19 = arith.constant 0 : index
    %c0_20 = arith.constant 0 : index
    %33 = vector.load %arg8[%c0_19, %c0_20] : memref<5x8xf32, #tpu.memory_space<vmem>>, vector<5x8xf32>
    tpu.vector_store %arg8[%c0_19, %c0_20], %32 {strides = array<i32>} : memref<5x8xf32, #tpu.memory_space<vmem>>, vector<5x8xf32>,
    return
  }
  func.func @transform_0(%arg0: i32) -> (i32, i32) {
    %c0_i32 = arith.constant 0 : i32
    %c0_i32_0 = arith.constant 0 : i32
    return %arg0, %c0_i32 : i32, i32
  }
  func.func @transform_1(%arg0: i32) -> (i32, i32) {
    %c0_i32 = arith.constant 0 : i32
    %c0_i32_0 = arith.constant 0 : i32
    %c0_i32_1 = arith.constant 0 : i32
    return %c0_i32, %c0_i32_0 : i32, i32
  }
  func.func @transform_2(%arg0: i32) -> (i32, i32) {
    %c0_i32 = arith.constant 0 : i32
    %c0_i32_0 = arith.constant 0 : i32
    %c0_i32_1 = arith.constant 0 : i32
    return %c0_i32, %c0_i32_0 : i32, i32
  }
  func.func @transform_3(%arg0: i32) -> (i32, i32) {
    %c0_i32 = arith.constant 0 : i32
    %c0_i32_0 = arith.constant 0 : i32
    %c0_i32_1 = arith.constant 0 : i32
    return %c0_i32, %c0_i32_0 : i32, i32
  }
  func.func @transform_4(%arg0: i32) -> (i32, i32) {
    %c0_i32 = arith.constant 0 : i32
    %c0_i32_0 = arith.constant 0 : i32
    %c0_i32_1 = arith.constant 0 : i32
    return %c0_i32, %c0_i32_0 : i32, i32
  }
  func.func @transform_5(%arg0: i32) -> (i32, i32) {
    %c0_i32 = arith.constant 0 : i32
    %c0_i32_0 = arith.constant 0 : i32
    %c0_i32_1 = arith.constant 0 : i32
    return %c0_i32, %c0_i32_0 : i32, i32
  }
  func.func @transform_6(%arg0: i32) -> (i32, i32) {
    %c0_i32 = arith.constant 0 : i32
    %c0_i32_0 = arith.constant 0 : i32
    %c0_i32_1 = arith.constant 0 : i32
    return %c0_i32, %c0_i32_0 : i32, i32
  }
  func.func @transform_7(%arg0: i32) -> (i32, i32) {
    %c0_i32 = arith.constant 0 : i32
    %c0_i32_0 = arith.constant 0 : i32
    return %c0_i32, %arg0 : i32, i32
  }
}

</mosaic_0001>

<llo_original>
// kernel: tpu_custom_call.1
$region0: #{tpu_custom_call.1}
  #allocation0 [shape = 'u32[]', space=smem, size = 0x4, offset = 0x4, fixed_abs, tag = 'smem constant byte address 0x4 - core index']
  #allocation1 [shape = 'u32[72,128]{1,0:T(1,128)}', space=vmem, size = 0x9000, scoped, tag = 'internal scratch']
  %s0 = inlined_call_operand.vmem [shape: f32[8,16], index: 0, kind: input, shape index: {}]
  %s1 = inlined_call_operand.vmem [shape: bf16[256,16], index: 1, kind: input, shape index: {}]
  %s2 = inlined_call_operand.vmem [shape: f32[256,1], index: 2, kind: input, shape index: {}]
  %s3 = inlined_call_operand.vmem [shape: bf16[64,256], index: 3, kind: input, shape index: {}]
  %s4 = inlined_call_operand.vmem [shape: f32[64,1], index: 4, kind: input, shape index: {}]
  %s5 = inlined_call_operand.vmem [shape: bf16[5,64], index: 5, kind: input, shape index: {}]
  %s6 = inlined_call_operand.vmem [shape: f32[5,1], index: 6, kind: input, shape index: {}]
  %s7 = inlined_call_operand.hbm [shape: f32[5,8], index: 7, kind: output, shape index: {}]
  %s8 = sld [smem:[#allocation0]]
  $region38: #{tpu_custom_call.1} parent=0
    _
  %s10 = ssub.s32 1, %s8
  %s11 = scalar_select 0, %s10, %s8
  $region1: #{tpu_custom_call.1} parent=0
    #allocation2 [shape = 'u8[4096]{0}', space=vmem, size = 0x1000, scoped, tag = 'output window, operand 0, single buffered']
    #allocation3 [shape = 's32[1]{0}', space=sflag, size = 0x4, scoped, tag = 'scoped memory for tpu_custom_call.1']
    %12 = vsyncpa [#allocation3], 0
    // Predicated region
    $region2: #{tpu_custom_call.1} parent=1 // pred_check
      _
    $region3: #{tpu_custom_call.1} parent=1 // pred_check_branch
      %14 = sbr.rel (0) target = $region5
    $region4: #{tpu_custom_call.1} parent=1 // pred_region
      _
    $region5: #{tpu_custom_call.1} parent=1 // pred_fallthru
      _
    // Predicated region
    $region6: #{tpu_custom_call.1} parent=1 // pred_check
      _
    $region7: #{tpu_custom_call.1} parent=1 // pred_check_branch
      %16 = sbr.rel (0) target = $region9
    $region8: #{tpu_custom_call.1} parent=1 // pred_region
      _
    $region9: #{tpu_custom_call.1} parent=1 // pred_fallthru
      _
    // Predicated region
    $region10: #{tpu_custom_call.1} parent=1 // pred_check
      _
    $region11: #{tpu_custom_call.1} parent=1 // pred_check_branch
      %18 = sbr.rel (0) target = $region13
    $region12: #{tpu_custom_call.1} parent=1 // pred_region
      _
    $region13: #{tpu_custom_call.1} parent=1 // pred_fallthru
      _
    // Predicated region
    $region14: #{tpu_custom_call.1} parent=1 // pred_check
      _
    $region15: #{tpu_custom_call.1} parent=1 // pred_check_branch
      %20 = sbr.rel (0) target = $region17
    $region16: #{tpu_custom_call.1} parent=1 // pred_region
      _
    $region17: #{tpu_custom_call.1} parent=1 // pred_fallthru
      _
    // Predicated region
    $region18: #{tpu_custom_call.1} parent=1 // pred_check
      _
    $region19: #{tpu_custom_call.1} parent=1 // pred_check_branch
      %22 = sbr.rel (0) target = $region21
    $region20: #{tpu_custom_call.1} parent=1 // pred_region
      _
    $region21: #{tpu_custom_call.1} parent=1 // pred_fallthru
      _
    // Predicated region
    $region22: #{tpu_custom_call.1} parent=1 // pred_check
      _
    $region23: #{tpu_custom_call.1} parent=1 // pred_check_branch
      %24 = sbr.rel (0) target = $region25
    $region24: #{tpu_custom_call.1} parent=1 // pred_region
      _
    $region25: #{tpu_custom_call.1} parent=1 // pred_fallthru
      _
    // Predicated region
    $region26: #{tpu_custom_call.1} parent=1 // pred_check
      _
    $region27: #{tpu_custom_call.1} parent=1 // pred_check_branch
      %26 = sbr.rel (0) target = $region29
    $region28: #{tpu_custom_call.1} parent=1 // pred_region
      _
    $region29: #{tpu_custom_call.1} parent=1 // pred_fallthru
      _
    %v28 = vld [vmem:[%s0] sm:$0xff]
    %v29 = vpack.c.bf16 %v28, %v28
    %v30 = vld [vmem:[%s1] sm:$0xf]
    %v31 = vld [vmem:[%s1 + $0x4] sm:$0xf]
    %v32 = vld [vmem:[%s1 + $0x8] sm:$0xf]
    %v33 = vld [vmem:[%s1 + $0xc] sm:$0xf]
    %v34 = vld [vmem:[%s1 + $0x10] sm:$0xf]
    %v35 = vld [vmem:[%s1 + $0x14] sm:$0xf]
    %v36 = vld [vmem:[%s1 + $0x18] sm:$0xf]
    %v37 = vld [vmem:[%s1 + $0x1c] sm:$0xf]
    %v38 = vld [vmem:[%s1 + $0x20] sm:$0xf]
    %v39 = vld [vmem:[%s1 + $0x24] sm:$0xf]
    %v40 = vld [vmem:[%s1 + $0x28] sm:$0xf]
    %v41 = vld [vmem:[%s1 + $0x2c] sm:$0xf]
    %v42 = vld [vmem:[%s1 + $0x30] sm:$0xf]
    %v43 = vld [vmem:[%s1 + $0x34] sm:$0xf]
    %v44 = vld [vmem:[%s1 + $0x38] sm:$0xf]
    %v45 = vld [vmem:[%s1 + $0x3c] sm:$0xf]
    %v46 = vld [vmem:[%s1 + $0x40] sm:$0xf]
    %v47 = vld [vmem:[%s1 + $0x44] sm:$0xf]
    %v48 = vld [vmem:[%s1 + $0x48] sm:$0xf]
    %v49 = vld [vmem:[%s1 + $0x4c] sm:$0xf]
    %v50 = vld [vmem:[%s1 + $0x50] sm:$0xf]
    %v51 = vld [vmem:[%s1 + $0x54] sm:$0xf]
    %v52 = vld [vmem:[%s1 + $0x58] sm:$0xf]
    %v53 = vld [vmem:[%s1 + $0x5c] sm:$0xf]
    %v54 = vld [vmem:[%s1 + $0x60] sm:$0xf]
    %v55 = vld [vmem:[%s1 + $0x64] sm:$0xf]
    %v56 = vld [vmem:[%s1 + $0x68] sm:$0xf]
    %v57 = vld [vmem:[%s1 + $0x6c] sm:$0xf]
    %v58 = vld [vmem:[%s1 + $0x70] sm:$0xf]
    %v59 = vld [vmem:[%s1 + $0x74] sm:$0xf]
    %v60 = vld [vmem:[%s1 + $0x78] sm:$0xf]
    %v61 = vld [vmem:[%s1 + $0x7c] sm:$0xf]
    %v62 = vld [vmem:[%s2] sm:$0xff]
    %v63 = vld [vmem:[%s2 + $0x8] sm:$0xff]
    %v64 = vld [vmem:[%s2 + $0x10] sm:$0xff]
    %v65 = vld [vmem:[%s2 + $0x18] sm:$0xff]
    %v66 = vld [vmem:[%s2 + $0x20] sm:$0xff]
    %v67 = vld [vmem:[%s2 + $0x28] sm:$0xff]
    %v68 = vld [vmem:[%s2 + $0x30] sm:$0xff]
    %v69 = vld [vmem:[%s2 + $0x38] sm:$0xff]
    %v70 = vld [vmem:[%s2 + $0x40] sm:$0xff]
    %v71 = vld [vmem:[%s2 + $0x48] sm:$0xff]
    %v72 = vld [vmem:[%s2 + $0x50] sm:$0xff]
    %v73 = vld [vmem:[%s2 + $0x58] sm:$0xff]
    %v74 = vld [vmem:[%s2 + $0x60] sm:$0xff]
    %v75 = vld [vmem:[%s2 + $0x68] sm:$0xff]
    %v76 = vld [vmem:[%s2 + $0x70] sm:$0xff]
    %v77 = vld [vmem:[%s2 + $0x78] sm:$0xff]
    %v78 = vld [vmem:[%s2 + $0x80] sm:$0xff]
    %v79 = vld [vmem:[%s2 + $0x88] sm:$0xff]
    %v80 = vld [vmem:[%s2 + $0x90] sm:$0xff]
    %v81 = vld [vmem:[%s2 + $0x98] sm:$0xff]
    %v82 = vld [vmem:[%s2 + $0xa0] sm:$0xff]
    %v83 = vld [vmem:[%s2 + $0xa8] sm:$0xff]
    %v84 = vld [vmem:[%s2 + $0xb0] sm:$0xff]
    %v85 = vld [vmem:[%s2 + $0xb8] sm:$0xff]
    %v86 = vld [vmem:[%s2 + $0xc0] sm:$0xff]
    %v87 = vld [vmem:[%s2 + $0xc8] sm:$0xff]
    %v88 = vld [vmem:[%s2 + $0xd0] sm:$0xff]
    %v89 = vld [vmem:[%s2 + $0xd8] sm:$0xff]
    %v90 = vld [vmem:[%s2 + $0xe0] sm:$0xff]
    %v91 = vld [vmem:[%s2 + $0xe8] sm:$0xff]
    %v92 = vld [vmem:[%s2 + $0xf0] sm:$0xff]
    %v93 = vld [vmem:[%s2 + $0xf8] sm:$0xff]
    %95 = vset.pattern.permute.xlu0 0
    %96 = vperm.xlu0 %95, %v62
    %v97 = vpop.permute.xlu0 %96
    %100 = vset.pattern.permute.xlu0 0
    %101 = vperm.xlu0 %100, %v63
    %v102 = vpop.permute.xlu0 %101
    %105 = vset.pattern.permute.xlu0 0
    %106 = vperm.xlu0 %105, %v64
    %v107 = vpop.permute.xlu0 %106
    %110 = vset.pattern.permute.xlu0 0
    %111 = vperm.xlu0 %110, %v65
    %v112 = vpop.permute.xlu0 %111
    %115 = vset.pattern.permute.xlu0 0
    %116 = vperm.xlu0 %115, %v66
    %v117 = vpop.permute.xlu0 %116
    %120 = vset.pattern.permute.xlu0 0
    %121 = vperm.xlu0 %120, %v67
    %v122 = vpop.permute.xlu0 %121
    %125 = vset.pattern.permute.xlu0 0
    %126 = vperm.xlu0 %125, %v68
    %v127 = vpop.permute.xlu0 %126
    %130 = vset.pattern.permute.xlu0 0
    %131 = vperm.xlu0 %130, %v69
    %v132 = vpop.permute.xlu0 %131
    %135 = vset.pattern.permute.xlu0 0
    %136 = vperm.xlu0 %135, %v70
    %v137 = vpop.permute.xlu0 %136
    %140 = vset.pattern.permute.xlu0 0
    %141 = vperm.xlu0 %140, %v71
    %v142 = vpop.permute.xlu0 %141
    %145 = vset.pattern.permute.xlu0 0
    %146 = vperm.xlu0 %145, %v72
    %v147 = vpop.permute.xlu0 %146
    %150 = vset.pattern.permute.xlu0 0
    %151 = vperm.xlu0 %150, %v73
    %v152 = vpop.permute.xlu0 %151
    %155 = vset.pattern.permute.xlu0 0
    %156 = vperm.xlu0 %155, %v74
    %v157 = vpop.permute.xlu0 %156
    %160 = vset.pattern.permute.xlu0 0
    %161 = vperm.xlu0 %160, %v75
    %v162 = vpop.permute.xlu0 %161
    %165 = vset.pattern.permute.xlu0 0
    %166 = vperm.xlu0 %165, %v76
    %v167 = vpop.permute.xlu0 %166
    %170 = vset.pattern.permute.xlu0 0
    %171 = vperm.xlu0 %170, %v77
    %v172 = vpop.permute.xlu0 %171
    %175 = vset.pattern.permute.xlu0 0
    %176 = vperm.xlu0 %175, %v78
    %v177 = vpop.permute.xlu0 %176
    %180 = vset.pattern.permute.xlu0 0
    %181 = vperm.xlu0 %180, %v79
    %v182 = vpop.permute.xlu0 %181
    %185 = vset.pattern.permute.xlu0 0
    %186 = vperm.xlu0 %185, %v80
    %v187 = vpop.permute.xlu0 %186
    %190 = vset.pattern.permute.xlu0 0
    %191 = vperm.xlu0 %190, %v81
    %v192 = vpop.permute.xlu0 %191
    %195 = vset.pattern.permute.xlu0 0
    %196 = vperm.xlu0 %195, %v82
    %v197 = vpop.permute.xlu0 %196
    %200 = vset.pattern.permute.xlu0 0
    %201 = vperm.xlu0 %200, %v83
    %v202 = vpop.permute.xlu0 %201
    %205 = vset.pattern.permute.xlu0 0
    %206 = vperm.xlu0 %205, %v84
    %v207 = vpop.permute.xlu0 %206
    %210 = vset.pattern.permute.xlu0 0
    %211 = vperm.xlu0 %210, %v85
    %v212 = vpop.permute.xlu0 %211
    %215 = vset.pattern.permute.xlu0 0
    %216 = vperm.xlu0 %215, %v86
    %v217 = vpop.permute.xlu0 %216
    %220 = vset.pattern.permute.xlu0 0
    %221 = vperm.xlu0 %220, %v87
    %v222 = vpop.permute.xlu0 %221
    %225 = vset.pattern.permute.xlu0 0
    %226 = vperm.xlu0 %225, %v88
    %v227 = vpop.permute.xlu0 %226
    %230 = vset.pattern.permute.xlu0 0
    %231 = vperm.xlu0 %230, %v89
    %v232 = vpop.permute.xlu0 %231
    %235 = vset.pattern.permute.xlu0 0
    %236 = vperm.xlu0 %235, %v90
    %v237 = vpop.permute.xlu0 %236
    %240 = vset.pattern.permute.xlu0 0
    %241 = vperm.xlu0 %240, %v91
    %v242 = vpop.permute.xlu0 %241
    %245 = vset.pattern.permute.xlu0 0
    %246 = vperm.xlu0 %245, %v92
    %v247 = vpop.permute.xlu0 %246
    %250 = vset.pattern.permute.xlu0 0
    %251 = vperm.xlu0 %250, %v93
    %v252 = vpop.permute.xlu0 %251
    %v286 = vunpack.c.l.b16 %v30
    %v287 = vunpack.c.l.b16 %v31
    %v288 = vunpack.c.l.b16 %v32
    %v289 = vunpack.c.l.b16 %v33
    %v290 = vunpack.c.l.b16 %v34
    %v291 = vunpack.c.l.b16 %v35
    %v292 = vunpack.c.l.b16 %v36
    %v293 = vunpack.c.l.b16 %v37
    %v294 = vunpack.c.l.b16 %v38
    %v295 = vunpack.c.l.b16 %v39
    %v296 = vunpack.c.l.b16 %v40
    %v297 = vunpack.c.l.b16 %v41
    %v298 = vunpack.c.l.b16 %v42
    %v299 = vunpack.c.l.b16 %v43
    %v300 = vunpack.c.l.b16 %v44
    %v301 = vunpack.c.l.b16 %v45
    %v302 = vunpack.c.l.b16 %v46
    %v303 = vunpack.c.l.b16 %v47
    %v304 = vunpack.c.l.b16 %v48
    %v305 = vunpack.c.l.b16 %v49
    %v306 = vunpack.c.l.b16 %v50
    %v307 = vunpack.c.l.b16 %v51
    %v308 = vunpack.c.l.b16 %v52
    %v309 = vunpack.c.l.b16 %v53
    %v310 = vunpack.c.l.b16 %v54
    %v311 = vunpack.c.l.b16 %v55
    %v312 = vunpack.c.l.b16 %v56
    %v313 = vunpack.c.l.b16 %v57
    %v314 = vunpack.c.l.b16 %v58
    %v315 = vunpack.c.l.b16 %v59
    %v316 = vunpack.c.l.b16 %v60
    %v317 = vunpack.c.l.b16 %v61
    %v318 = vpack.c.b16 %v287, %v286
    %v319 = vpack.c.b16 %v289, %v288
    %v320 = vpack.c.b16 %v291, %v290
    %v321 = vpack.c.b16 %v293, %v292
    %v322 = vpack.c.b16 %v295, %v294
    %v323 = vpack.c.b16 %v297, %v296
    %v324 = vpack.c.b16 %v299, %v298
    %v325 = vpack.c.b16 %v301, %v300
    %v326 = vpack.c.b16 %v303, %v302
    %v327 = vpack.c.b16 %v305, %v304
    %v328 = vpack.c.b16 %v307, %v306
    %v329 = vpack.c.b16 %v309, %v308
    %v330 = vpack.c.b16 %v311, %v310
    %v331 = vpack.c.b16 %v313, %v312
    %v332 = vpack.c.b16 %v315, %v314
    %v333 = vpack.c.b16 %v317, %v316
    %vm334 = vcmask 130048
    %v336 = vsel %vm334, %v318, 0
    %v339 = vsel %vm334, %v319, 0
    %v342 = vsel %vm334, %v320, 0
    %v345 = vsel %vm334, %v321, 0
    %v348 = vsel %vm334, %v322, 0
    %v351 = vsel %vm334, %v323, 0
    %v354 = vsel %vm334, %v324, 0
    %v357 = vsel %vm334, %v325, 0
    %v360 = vsel %vm334, %v326, 0
    %v363 = vsel %vm334, %v327, 0
    %v366 = vsel %vm334, %v328, 0
    %v369 = vsel %vm334, %v329, 0
    %v372 = vsel %vm334, %v330, 0
    %v375 = vsel %vm334, %v331, 0
    %v378 = vsel %vm334, %v332, 0
    %v381 = vsel %vm334, %v333, 0
    %v384 = vsel %vm334, %v29, 0
    %386 = vmatpush.bf16.xpose.msra.mxu0 0
    %387 = vmatpush.bf16.xpose.msra.mxu0 0
    %388 = vmatpush.bf16.xpose.msra.mxu0 0
    %389 = vmatpush.bf16.xpose.msra.mxu0 0
    %390 = vmatpush.bf16.xpose.msra.mxu0 0
    %391 = vmatpush.bf16.xpose.msra.mxu0 0
    %392 = vmatpush.bf16.xpose.msra.mxu0 0
    %393 = vmatpush.bf16.xpose.msra.mxu0 %v384
    %394 = vmatmul.bf16.gmra.mxu0 %v336
    %v395 = vpop.f32.mrf.mxu0
    %v396 = vadd.f32 %v97, %v395
    %v397 = vpop.f32.mrf.mxu0
    %v398 = vadd.f32 %v102, %v397
    %399 = vmatmul.bf16.gmra.mxu0 %v339
    %v400 = vpop.f32.mrf.mxu0
    %v401 = vadd.f32 %v107, %v400
    %v402 = vpop.f32.mrf.mxu0
    %v403 = vadd.f32 %v112, %v402
    %404 = vmatmul.bf16.gmra.mxu0 %v342
    %v405 = vpop.f32.mrf.mxu0
    %v406 = vadd.f32 %v117, %v405
    %v407 = vpop.f32.mrf.mxu0
    %v408 = vadd.f32 %v122, %v407
    %409 = vmatmul.bf16.gmra.mxu0 %v345
    %v410 = vpop.f32.mrf.mxu0
    %v411 = vadd.f32 %v127, %v410
    %v412 = vpop.f32.mrf.mxu0
    %v413 = vadd.f32 %v132, %v412
    %414 = vmatmul.bf16.gmra.mxu0 %v348
    %v415 = vpop.f32.mrf.mxu0
    %v416 = vadd.f32 %v137, %v415
    %v417 = vpop.f32.mrf.mxu0
    %v418 = vadd.f32 %v142, %v417
    %419 = vmatmul.bf16.gmra.mxu0 %v351
    %v420 = vpop.f32.mrf.mxu0
    %v421 = vadd.f32 %v147, %v420
    %v422 = vpop.f32.mrf.mxu0
    %v423 = vadd.f32 %v152, %v422
    %424 = vmatmul.bf16.gmra.mxu0 %v354
    %v425 = vpop.f32.mrf.mxu0
    %v426 = vadd.f32 %v157, %v425
    %v427 = vpop.f32.mrf.mxu0
    %v428 = vadd.f32 %v162, %v427
    %429 = vmatmul.bf16.gmra.mxu0 %v357
    %v430 = vpop.f32.mrf.mxu0
    %v431 = vadd.f32 %v167, %v430
    %v432 = vpop.f32.mrf.mxu0
    %v433 = vadd.f32 %v172, %v432
    %434 = vmatmul.bf16.gmra.mxu0 %v360
    %v435 = vpop.f32.mrf.mxu0
    %v436 = vadd.f32 %v177, %v435
    %v437 = vpop.f32.mrf.mxu0
    %v438 = vadd.f32 %v182, %v437
    %439 = vmatmul.bf16.gmra.mxu0 %v363
    %v440 = vpop.f32.mrf.mxu0
    %v441 = vadd.f32 %v187, %v440
    %v442 = vpop.f32.mrf.mxu0
    %v443 = vadd.f32 %v192, %v442
    %444 = vmatmul.bf16.gmra.mxu0 %v366
    %v445 = vpop.f32.mrf.mxu0
    %v446 = vadd.f32 %v197, %v445
    %v447 = vpop.f32.mrf.mxu0
    %v448 = vadd.f32 %v202, %v447
    %449 = vmatmul.bf16.gmra.mxu0 %v369
    %v450 = vpop.f32.mrf.mxu0
    %v451 = vadd.f32 %v207, %v450
    %v452 = vpop.f32.mrf.mxu0
    %v453 = vadd.f32 %v212, %v452
    %454 = vmatmul.bf16.gmra.mxu0 %v372
    %v455 = vpop.f32.mrf.mxu0
    %v456 = vadd.f32 %v217, %v455
    %v457 = vpop.f32.mrf.mxu0
    %v458 = vadd.f32 %v222, %v457
    %459 = vmatmul.bf16.gmra.mxu0 %v375
    %v460 = vpop.f32.mrf.mxu0
    %v461 = vadd.f32 %v227, %v460
    %v462 = vpop.f32.mrf.mxu0
    %v463 = vadd.f32 %v232, %v462
    %464 = vmatmul.bf16.gmra.mxu0 %v378
    %v465 = vpop.f32.mrf.mxu0
    %v466 = vadd.f32 %v237, %v465
    %v467 = vpop.f32.mrf.mxu0
    %v468 = vadd.f32 %v242, %v467
    %469 = vmatmul.bf16.gmra.mxu0 %v381
    %v470 = vpop.f32.mrf.mxu0
    %v471 = vadd.f32 %v247, %v470
    %v472 = vpop.f32.mrf.mxu0
    %v473 = vadd.f32 %v252, %v472
    %474 = vdwg.mxu0
    %v475 = vmax.f32 %v396, 0.0
    %v476 = vmax.f32 %v398, 0.0
    %v477 = vmax.f32 %v401, 0.0
    %v478 = vmax.f32 %v403, 0.0
    %v479 = vmax.f32 %v406, 0.0
    %v480 = vmax.f32 %v408, 0.0
    %v481 = vmax.f32 %v411, 0.0
    %v482 = vmax.f32 %v413, 0.0
    %v483 = vmax.f32 %v416, 0.0
    %v484 = vmax.f32 %v418, 0.0
    %v485 = vmax.f32 %v421, 0.0
    %v486 = vmax.f32 %v423, 0.0
    %v487 = vmax.f32 %v426, 0.0
    %v488 = vmax.f32 %v428, 0.0
    %v489 = vmax.f32 %v431, 0.0
    %v490 = vmax.f32 %v433, 0.0
    %v491 = vmax.f32 %v436, 0.0
    %v492 = vmax.f32 %v438, 0.0
    %v493 = vmax.f32 %v441, 0.0
    %v494 = vmax.f32 %v443, 0.0
    %v495 = vmax.f32 %v446, 0.0
    %v496 = vmax.f32 %v448, 0.0
    %v497 = vmax.f32 %v451, 0.0
    %v498 = vmax.f32 %v453, 0.0
    %v499 = vmax.f32 %v456, 0.0
    %v500 = vmax.f32 %v458, 0.0
    %v501 = vmax.f32 %v461, 0.0
    %v502 = vmax.f32 %v463, 0.0
    %v503 = vmax.f32 %v466, 0.0
    %v504 = vmax.f32 %v468, 0.0
    %v505 = vmax.f32 %v471, 0.0
    %v506 = vmax.f32 %v473, 0.0
    %v507 = vld [vmem:[%s3] sm:$0xff]
    %v508 = vld [vmem:[%s3 + $0x8] sm:$0xff]
    %v509 = vld [vmem:[%s3 + $0x10] sm:$0xff]
    %v510 = vld [vmem:[%s3 + $0x18] sm:$0xff]
    %v511 = vld [vmem:[%s3 + $0x20] sm:$0xff]
    %v512 = vld [vmem:[%s3 + $0x28] sm:$0xff]
    %v513 = vld [vmem:[%s3 + $0x30] sm:$0xff]
    %v514 = vld [vmem:[%s3 + $0x38] sm:$0xff]
    %v515 = vpack.c.bf16 %v476, %v475
    %v516 = vpack.c.bf16 %v478, %v477
    %v517 = vpack.c.bf16 %v480, %v479
    %v518 = vpack.c.bf16 %v482, %v481
    %v519 = vpack.c.bf16 %v484, %v483
    %v520 = vpack.c.bf16 %v486, %v485
    %v521 = vpack.c.bf16 %v488, %v487
    %v522 = vpack.c.bf16 %v490, %v489
    %v523 = vpack.c.bf16 %v492, %v491
    %v524 = vpack.c.bf16 %v494, %v493
    %v525 = vpack.c.bf16 %v496, %v495
    %v526 = vpack.c.bf16 %v498, %v497
    %v527 = vpack.c.bf16 %v500, %v499
    %v528 = vpack.c.bf16 %v502, %v501
    %v529 = vpack.c.bf16 %v504, %v503
    %v530 = vpack.c.bf16 %v506, %v505
    %v531 = vld [vmem:[%s4] sm:$0xff]
    %v532 = vld [vmem:[%s4 + $0x8] sm:$0xff]
    %v533 = vld [vmem:[%s4 + $0x10] sm:$0xff]
    %v534 = vld [vmem:[%s4 + $0x18] sm:$0xff]
    %v535 = vld [vmem:[%s4 + $0x20] sm:$0xff]
    %v536 = vld [vmem:[%s4 + $0x28] sm:$0xff]
    %v537 = vld [vmem:[%s4 + $0x30] sm:$0xff]
    %v538 = vld [vmem:[%s4 + $0x38] sm:$0xff]
    %540 = vset.pattern.permute.xlu0 0
    %541 = vperm.xlu0 %540, %v531
    %v542 = vpop.permute.xlu0 %541
    %545 = vset.pattern.permute.xlu0 0
    %546 = vperm.xlu0 %545, %v532
    %v547 = vpop.permute.xlu0 %546
    %550 = vset.pattern.permute.xlu0 0
    %551 = vperm.xlu0 %550, %v533
    %v552 = vpop.permute.xlu0 %551
    %555 = vset.pattern.permute.xlu0 0
    %556 = vperm.xlu0 %555, %v534
    %v557 = vpop.permute.xlu0 %556
    %560 = vset.pattern.permute.xlu0 0
    %561 = vperm.xlu0 %560, %v535
    %v562 = vpop.permute.xlu0 %561
    %565 = vset.pattern.permute.xlu0 0
    %566 = vperm.xlu0 %565, %v536
    %v567 = vpop.permute.xlu0 %566
    %570 = vset.pattern.permute.xlu0 0
    %571 = vperm.xlu0 %570, %v537
    %v572 = vpop.permute.xlu0 %571
    %575 = vset.pattern.permute.xlu0 0
    %576 = vperm.xlu0 %575, %v538
    %v577 = vpop.permute.xlu0 %576
    %v587 = vunpack.c.l.b16 %v507
    %v588 = vunpack.c.h.b16 %v507
    %v589 = vunpack.c.l.b16 %v508
    %v590 = vunpack.c.h.b16 %v508
    %v591 = vunpack.c.l.b16 %v509
    %v592 = vunpack.c.h.b16 %v509
    %v593 = vunpack.c.l.b16 %v510
    %v594 = vunpack.c.h.b16 %v510
    %v595 = vunpack.c.l.b16 %v511
    %v596 = vunpack.c.h.b16 %v511
    %v597 = vunpack.c.l.b16 %v512
    %v598 = vunpack.c.h.b16 %v512
    %v599 = vunpack.c.l.b16 %v513
    %v600 = vunpack.c.h.b16 %v513
    %v601 = vunpack.c.l.b16 %v514
    %v602 = vunpack.c.h.b16 %v514
    %v603 = vpack.c.b16 %v589, %v587
    %v604 = vpack.c.b16 %v590, %v588
    %v605 = vpack.c.b16 %v593, %v591
    %v606 = vpack.c.b16 %v594, %v592
    %v607 = vpack.c.b16 %v597, %v595
    %v608 = vpack.c.b16 %v598, %v596
    %v609 = vpack.c.b16 %v601, %v599
    %v610 = vpack.c.b16 %v602, %v600
    %619 = vmatpush.bf16.msra.mxu0 %v522
    %620 = vmatpush.bf16.msra.mxu0 %v521
    %621 = vmatpush.bf16.msra.mxu0 %v520
    %622 = vmatpush.bf16.msra.mxu0 %v519
    %623 = vmatpush.bf16.msra.mxu0 %v518
    %624 = vmatpush.bf16.msra.mxu0 %v517
    %625 = vmatpush.bf16.msra.mxu0 %v516
    %626 = vmatpush.bf16.msra.mxu0 %v515
    %627 = vmatmul.bf16.gmra.mxu0 %v603
    %v628 = vpop.f32.mrf.mxu0
    %v629 = vadd.f32 %v542, %v628
    %v630 = vpop.f32.mrf.mxu0
    %v631 = vadd.f32 %v547, %v630
    %632 = vmatmul.bf16.gmra.mxu0 %v605
    %v633 = vpop.f32.mrf.mxu0
    %v634 = vadd.f32 %v552, %v633
    %v635 = vpop.f32.mrf.mxu0
    %v636 = vadd.f32 %v557, %v635
    %637 = vmatmul.bf16.gmra.mxu0 %v607
    %v638 = vpop.f32.mrf.mxu0
    %v639 = vadd.f32 %v562, %v638
    %v640 = vpop.f32.mrf.mxu0
    %v641 = vadd.f32 %v567, %v640
    %642 = vmatmul.bf16.gmra.mxu0 %v609
    %v643 = vpop.f32.mrf.mxu0
    %v644 = vadd.f32 %v572, %v643
    %v645 = vpop.f32.mrf.mxu0
    %v646 = vadd.f32 %v577, %v645
    %647 = vdwg.mxu0
    %648 = vmatpush.bf16.msra.mxu0 %v530
    %649 = vmatpush.bf16.msra.mxu0 %v529
    %650 = vmatpush.bf16.msra.mxu0 %v528
    %651 = vmatpush.bf16.msra.mxu0 %v527
    %652 = vmatpush.bf16.msra.mxu0 %v526
    %653 = vmatpush.bf16.msra.mxu0 %v525
    %654 = vmatpush.bf16.msra.mxu0 %v524
    %655 = vmatpush.bf16.msra.mxu0 %v523
    %656 = vmatmul.bf16.gmra.mxu0 %v604
    %v657 = vpop.f32.mrf.mxu0
    %v658 = vadd.f32 %v629, %v657
    %v659 = vpop.f32.mrf.mxu0
    %v660 = vadd.f32 %v631, %v659
    %661 = vmatmul.bf16.gmra.mxu0 %v606
    %v662 = vpop.f32.mrf.mxu0
    %v663 = vadd.f32 %v634, %v662
    %v664 = vpop.f32.mrf.mxu0
    %v665 = vadd.f32 %v636, %v664
    %666 = vmatmul.bf16.gmra.mxu0 %v608
    %v667 = vpop.f32.mrf.mxu0
    %v668 = vadd.f32 %v639, %v667
    %v669 = vpop.f32.mrf.mxu0
    %v670 = vadd.f32 %v641, %v669
    %671 = vmatmul.bf16.gmra.mxu0 %v610
    %v672 = vpop.f32.mrf.mxu0
    %v673 = vadd.f32 %v644, %v672
    %v674 = vpop.f32.mrf.mxu0
    %v675 = vadd.f32 %v646, %v674
    %676 = vdwg.mxu0
    %v677 = vmax.f32 %v658, 0.0
    %v678 = vmax.f32 %v660, 0.0
    %v679 = vmax.f32 %v663, 0.0
    %v680 = vmax.f32 %v665, 0.0
    %v681 = vmax.f32 %v668, 0.0
    %v682 = vmax.f32 %v670, 0.0
    %v683 = vmax.f32 %v673, 0.0
    %v684 = vmax.f32 %v675, 0.0
    %v685 = vld [vmem:[%s5] sm:$0x7]
    %v686 = vpack.c.bf16 %v678, %v677
    %v687 = vpack.c.bf16 %v680, %v679
    %v688 = vpack.c.bf16 %v682, %v681
    %v689 = vpack.c.bf16 %v684, %v683
    %v690 = vld [vmem:[%s6] sm:$0x1f]
    %692 = vset.pattern.permute.xlu0 0
    %693 = vperm.xlu0 %692, %v690
    %v694 = vpop.permute.xlu0 %693
    %vm696 = vcmask 523264
    %v698 = vsel %vm696, %v685, 0
    %700 = vmatpush.bf16.msra.mxu0 0
    %701 = vmatpush.bf16.msra.mxu0 0
    %702 = vmatpush.bf16.msra.mxu0 0
    %703 = vmatpush.bf16.msra.mxu0 0
    %704 = vmatpush.bf16.msra.mxu0 %v689
    %705 = vmatpush.bf16.msra.mxu0 %v688
    %706 = vmatpush.bf16.msra.mxu0 %v687
    %707 = vmatpush.bf16.msra.mxu0 %v686
    %708 = vmatmul.bf16.gmra.mxu0 %v698
    %v709 = vpop.f32.mrf.mxu0
    %v710 = vadd.f32 %v694, %v709
    %v711 = vpop.f32.mrf.mxu0
    %712 = vdwg.mxu0
    %vm713 = vcmask 61440
    %v714 = vsel %vm713, %v710, -inf
    %v715 = vrot.slane %v714, 4
    %v716 = vmax.f32 %v714, %v715
    %v717 = vrot.slane %v716, 2
    %v718 = vmax.f32 %v716, %v717
    %v719 = vrot.slane %v718, 1
    %v720 = vmax.f32 %v718, %v719
    %v721 = vsub.f32 %v710, %v720
    %v722 = vmul.f32 %v721, 1.442695
    %v723 = vpow.pop %v722
    %v724 = vsel %vm713, %v723, 0.0
    %v725 = vrot.slane %v724, 4
    %v726 = vadd.f32 %v724, %v725
    %v727 = vrot.slane %v726, 2
    %v728 = vadd.f32 %v726, %v727
    %v729 = vrot.slane %v728, 1
    %v730 = vadd.f32 %v728, %v729
    %v731 = vrcp.pop %v730
    %v732 = vmul.f32 %v730, %v731
    %v733 = vsub.f32 1.0, %v732
    %v734 = vmul.f32 %v731, %v733
    %v735 = vadd.f32 %v731, %v734
    %vm736 = vweird.f32 %v730
    %vm737 = vweird.f32 %v731
    %vm738 = vmor %vm736, %vm737
    %v739 = vsel %vm738, %v731, %v735
    %v740 = vand.u32 2147483647, %v730
    %vm741 = vcmp.eq.f32.partialorder %v740, 8.507059e+37
    %v742 = vand.u32 %v730, 2147483648
    %v743 = vor.u32 1.1754944e-38, %v742
    %v744 = vsel %vm741, %v743, %v739
    %v745 = vmul.f32 %v723, %v744
    %746 = vst.msk [vmem:[#allocation2] sm:$0x1f] %vm713, %v745
    // Predicated region
    $region30: #{tpu_custom_call.1} parent=1 // pred_check
      _
    $region31: #{tpu_custom_call.1} parent=1 // pred_check_branch
      %748 = sbr.rel (0) target = $region33
    $region32: #{tpu_custom_call.1} parent=1 // pred_region
      %750 = vsyncadd [#allocation3], 0
      %s752 = sshll.u32 [#allocation2], 4
      %s753 = int_to_ptr.vmem [resolvable:$true] %s752
      %s754 = sshll.u32 %s7, 4
      %s755 = int_to_ptr.hbm [resolvable:$true] %s754
      %757 = dma.vmem_to_hbm [thread:$0]  %s753, 128, %s755, [#allocation3]
    $region33: #{tpu_custom_call.1} parent=1 // pred_fallthru
      _
    // Predicated region
    $region34: #{tpu_custom_call.1} parent=1 // pred_check
      _
    $region35: #{tpu_custom_call.1} parent=1 // pred_check_branch
      %759 = sbr.rel (0) target = $region37
    $region36: #{tpu_custom_call.1} parent=1 // pred_region
      %761 = dma.done [#allocation3], 128
    $region37: #{tpu_custom_call.1} parent=1 // pred_fallthru
      _
    %762 = vsyncpa [#allocation3], 1

</llo_original>
